<compile_context>
chip_gen: v6e
topology: v6e:2x2x1
jax: 0.10.0
libtpu: 0.0.40
codegen_flags: <defaults>
</compile_context>

<pallas_src>
import jax
import jax.numpy as jnp
from jax.experimental import pallas as pl
from jax.experimental.pallas import tpu as pltpu


_LANE = 128
_UNROLL_MAX_C = 32


def _round_up(x, m):
    return (x + m - 1) // m * m


def _ceil_div(a, b):
    return -(-a // b)


def _sse_kernel_unrolled(w_ref, u_ref, o_ref):
    # w_ref: (C,) float32 in SMEM (scalar reads); u_ref/o_ref: (TB, C, TL).
    # Per-channel FMA into a (TB, 1, TL) f32 accumulator -> no full-block
    # f32 temporary is materialized.
    C = u_ref.shape[1]
    q = u_ref[:, 0:1, :].astype(jnp.float32) * w_ref[0]
    for c in range(1, C):
        q = q + u_ref[:, c:c + 1, :].astype(jnp.float32) * w_ref[c]
    q = jax.nn.sigmoid(q)                              # (TB, 1, TL), EUP
    u = u_ref[...]
    # Elementwise scale in the input dtype (halves VALU/vreg traffic for bf16
    # on v6e/v7x; harmless on v5e).
    o_ref[...] = (u * q.astype(u.dtype)).astype(o_ref.dtype)


def _sse_kernel_reduce(w_ref, u_ref, o_ref):
    # Large-C path. w_ref: (1, C) float32, resident in VMEM.
    u = u_ref[...]
    w = w_ref[...]                                     # (1, C) f32
    q = jnp.sum(u.astype(jnp.float32) * w[:, :, None], axis=1, keepdims=True)
    q = jax.nn.sigmoid(q)                              # (TB, 1, TL)
    o_ref[...] = (u * q.astype(u.dtype)).astype(o_ref.dtype)


def _budget():
    """(target_block_bytes, vmem_limit_bytes), generation-aware."""
    vmem_phys = 64 * 1024 * 1024                       # conservative default (v7x)
    try:
        vmem_phys = int(pltpu.get_tpu_info().vmem_capacity_bytes)
    except Exception:
        pass
    if vmem_phys >= 100 * 1024 * 1024:                 # v5e / v6e: 128 MiB VMEM
        return 6 * 1024 * 1024, 64 * 1024 * 1024
    return 2 * 1024 * 1024, 36 * 1024 * 1024           # v7x: 64 MiB VMEM


def sse_forward(u, conv_weight):
    """sSE forward.

    u:           (N, C, L) activations (PyTorch NCL layout).
    conv_weight: Conv1d(C, 1, kernel_size=1, bias=False) weight,
                 shape (1, C, 1), (1, C) or (C,).
    """
    N, C, L = u.shape
    elem = jnp.dtype(u.dtype).itemsize
    pack = max(8, 32 // elem)                          # sublane pack: 8 f32, 16 bf16, 32 int8
    C_eff = _round_up(C, pack)

    target_block_bytes, vmem_limit_bytes = _budget()
    unrolled = C <= _UNROLL_MAX_C
    if not unrolled and elem < 4:
        # The reduce path materializes a block-sized f32 temp in-kernel;
        # leave VMEM headroom for it.
        target_block_bytes //= 2

    # --- length tile (lane axis) --------------------------------------------
    L_lane = _round_up(L, _LANE)
    row_bytes = C_eff * L_lane * elem                  # one batch row, VMEM-padded

    if row_bytes <= target_block_bytes:
        TL = L                                         # full extent (exempt from x128 rule)
        TB = int(min(N, max(1, target_block_bytes // row_bytes)))
    else:
        TB = 1
        tl_max = max(_LANE,
                     (target_block_bytes // (C_eff * elem)) // _LANE * _LANE)
        n_tiles = _ceil_div(L_lane, tl_max)
        # Even split into n_tiles lane-dense tiles (multiples of 128):
        TL = min(L_lane, _round_up(_ceil_div(L_lane, n_tiles), _LANE))

    # --- v7x: make sure a "parallel" axis has >= 2 grid steps ---------------
    if _ceil_div(N, TB) * _ceil_div(L, TL) == 1:
        if N >= 2:
            TB = _ceil_div(N, 2)
        elif L >= 2 * _LANE:
            TL = _round_up(_ceil_div(L, 2), _LANE)

    grid = (pl.cdiv(N, TB), pl.cdiv(L, TL))

    # --- weight placement ----------------------------------------------------
    if unrolled:
        kernel = _sse_kernel_unrolled
        w = conv_weight.reshape(C).astype(jnp.float32)
        w_spec = pl.BlockSpec(memory_space=pltpu.MemorySpace.SMEM)
    else:
        kernel = _sse_kernel_reduce
        w = conv_weight.reshape(1, C).astype(jnp.float32)
        # Constant block index -> weight stays resident in VMEM.
        w_spec = pl.BlockSpec((1, C), lambda i, j: (0, 0))

    cost = pl.CostEstimate(
        flops=3 * N * C * L,                           # conv MAC + final scale
        transcendentals=N * L,                         # sigmoid
        bytes_accessed=2 * N * C * L * elem + C * 4,
    )

    return pl.pallas_call(
        kernel,
        out_shape=jax.ShapeDtypeStruct((N, C, L), u.dtype),
        grid=grid,
        in_specs=[
            w_spec,
            pl.BlockSpec((TB, C, TL), lambda i, j: (i, 0, j)),
        ],
        out_specs=pl.BlockSpec((TB, C, TL), lambda i, j: (i, 0, j)),
        compiler_params=pltpu.CompilerParams(
            dimension_semantics=("parallel", "parallel"),
            vmem_limit_bytes=vmem_limit_bytes,
        ),
        cost_estimate=cost,
    )(w, u)


def sse_reference(u, conv_weight):
    w = conv_weight.reshape(-1)                        # (C,)
    q = jax.nn.sigmoid(jnp.einsum("ncl,c->nl", u, w))[:, None, :]
    return u * q


if __name__ == "__main__":
    key = jax.random.PRNGKey(0)
    k_u, k_w = jax.random.split(key)

    # Small shapes consistent with the module: batch=2, in_channels=4, L=200
    # (L intentionally not a multiple of 128 to exercise non-aligned extents).
    N, C, L = 2, 4, 200
    u = jax.random.normal(k_u, (N, C, L), dtype=jnp.float32)
    # Conv1d(C, 1, kernel_size=1, bias=False).weight has shape (1, C, 1).
    w = jax.random.normal(k_w, (1, C, 1), dtype=jnp.float32) * 0.1

    out = sse_forward(u, w)
    jax.block_until_ready(out)

    ref = sse_reference(u, w)
    assert out.shape == (N, C, L)
    assert jnp.allclose(out, ref, atol=1e-5, rtol=1e-5), "mismatch vs reference"

    print("KERNEL_OK")
</pallas_src>

<mosaic_0001>
module attributes {stable_mosaic.version = 11 : i64} {
  func.func @_sse_kernel_unrolled(%arg0: i32, %arg1: i32, %arg2: memref<4xf32, #tpu.memory_space<smem>>, %arg3: memref<1x4x200xf32, #tpu.memory_space<vmem>>, %arg4: memref<1x4x200xf32, #tpu.memory_space<vmem>>) attributes {dimension_semantics = [#tpu.dimension_semantics<parallel>, #tpu.dimension_semantics<parallel>], iteration_bounds = array<i64: 2, 1>, scalar_prefetch = 0 : i64, scratch_operands = 0 : i64, tpu.core_type = #tpu.core_type<tc>, window_params = [{transform_indices = @transform_0, window_bounds = array<i64: 4>}, {transform_indices = @transform_1, window_bounds = array<i64: 1, 4, 200>}, {transform_indices = @transform_2, window_bounds = array<i64: 1, 4, 200>}]} {
    %c0 = arith.constant 0 : index
    %c0_0 = arith.constant 0 : index
    %c0_1 = arith.constant 0 : index
    %0 = vector.load %arg3[%c0, %c0_0, %c0_1] : memref<1x4x200xf32, #tpu.memory_space<vmem>>, vector<1x1x200xf32>
    %c0_2 = arith.constant 0 : index
    %1 = memref.load %arg2[%c0_2] : memref<4xf32, #tpu.memory_space<smem>>
    %2 = vector.broadcast %1 : f32 to vector<1x1x200xf32>
    %3 = arith.mulf %0, %2 : vector<1x1x200xf32>
    %c0_3 = arith.constant 0 : index
    %c1 = arith.constant 1 : index
    %c0_4 = arith.constant 0 : index
    %4 = vector.load %arg3[%c0_3, %c1, %c0_4] : memref<1x4x200xf32, #tpu.memory_space<vmem>>, vector<1x1x200xf32>
    %c1_5 = arith.constant 1 : index
    %5 = memref.load %arg2[%c1_5] : memref<4xf32, #tpu.memory_space<smem>>
    %6 = vector.broadcast %5 : f32 to vector<1x1x200xf32>
    %7 = arith.mulf %4, %6 : vector<1x1x200xf32>
    %8 = arith.addf %3, %7 : vector<1x1x200xf32>
    %c0_6 = arith.constant 0 : index
    %c2 = arith.constant 2 : index
    %c0_7 = arith.constant 0 : index
    %9 = vector.load %arg3[%c0_6, %c2, %c0_7] : memref<1x4x200xf32, #tpu.memory_space<vmem>>, vector<1x1x200xf32>
    %c2_8 = arith.constant 2 : index
    %10 = memref.load %arg2[%c2_8] : memref<4xf32, #tpu.memory_space<smem>>
    %11 = vector.broadcast %10 : f32 to vector<1x1x200xf32>
    %12 = arith.mulf %9, %11 : vector<1x1x200xf32>
    %13 = arith.addf %8, %12 : vector<1x1x200xf32>
    %c0_9 = arith.constant 0 : index
    %c3 = arith.constant 3 : index
    %c0_10 = arith.constant 0 : index
    %14 = vector.load %arg3[%c0_9, %c3, %c0_10] : memref<1x4x200xf32, #tpu.memory_space<vmem>>, vector<1x1x200xf32>
    %c3_11 = arith.constant 3 : index
    %15 = memref.load %arg2[%c3_11] : memref<4xf32, #tpu.memory_space<smem>>
    %16 = vector.broadcast %15 : f32 to vector<1x1x200xf32>
    %17 = arith.mulf %14, %16 : vector<1x1x200xf32>
    %18 = arith.addf %13, %17 : vector<1x1x200xf32>
    %19 = arith.negf %18 : vector<1x1x200xf32>
    %20 = math.exp %19 : vector<1x1x200xf32>
    %cst = arith.constant 1.000000e+00 : f32
    %21 = vector.broadcast %cst : f32 to vector<1x1x200xf32>
    %22 = arith.addf %21, %20 : vector<1x1x200xf32>
    %23 = arith.divf %21, %22 : vector<1x1x200xf32>
    %c0_12 = arith.constant 0 : index
    %c0_13 = arith.constant 0 : index
    %c0_14 = arith.constant 0 : index
    %24 = vector.load %arg3[%c0_12, %c0_13, %c0_14] : memref<1x4x200xf32, #tpu.memory_space<vmem>>, vector<1x4x200xf32>
    %25 = vector.broadcast %23 : vector<1x1x200xf32> to vector<1x4x200xf32>
    %26 = arith.mulf %24, %25 : vector<1x4x200xf32>
    %c0_15 = arith.constant 0 : index
    %c0_16 = arith.constant 0 : index
    %c0_17 = arith.constant 0 : index
    %27 = vector.load %arg4[%c0_15, %c0_16, %c0_17] : memref<1x4x200xf32, #tpu.memory_space<vmem>>, vector<1x4x200xf32>
    tpu.vector_store %arg4[%c0_15, %c0_16, %c0_17], %26 {strides = array<i32>} : memref<1x4x200xf32, #tpu.memory_space<vmem>>, vector<1x4x200xf32>,
    return
  }
  func.func @transform_0(%arg0: i32, %arg1: i32) -> i32 {
    %c0_i32 = arith.constant 0 : i32
    %c0_i32_0 = arith.constant 0 : i32
    return %c0_i32 : i32
  }
  func.func @transform_1(%arg0: i32, %arg1: i32) -> (i32, i32, i32) {
    %c0_i32 = arith.constant 0 : i32
    %c0_i32_0 = arith.constant 0 : i32
    return %arg0, %c0_i32, %arg1 : i32, i32, i32
  }
  func.func @transform_2(%arg0: i32, %arg1: i32) -> (i32, i32, i32) {
    %c0_i32 = arith.constant 0 : i32
    %c0_i32_0 = arith.constant 0 : i32
    return %arg0, %c0_i32, %arg1 : i32, i32, i32
  }
}

</mosaic_0001>

<llo_original>
// kernel: tpu_custom_call.1
$region0: #{tpu_custom_call.1}
  #allocation0 [shape = 'u32[]', space=smem, size = 0x4, offset = 0x4, fixed_abs, tag = 'smem constant byte address 0x4 - core index']
  #allocation1 [shape = 'u32[144,128]{1,0:T(1,128)}', space=vmem, size = 0x12000, scoped, tag = 'internal scratch']
  %s0 = inlined_call_operand.hbm [shape: f32[4], index: 0, kind: input, shape index: {}]
  %s1 = inlined_call_operand.hbm [shape: f32[2,4,200], index: 1, kind: input, shape index: {}]
  %s2 = inlined_call_operand.hbm [shape: f32[2,4,200], index: 2, kind: output, shape index: {}]
  %s3 = sld [smem:[#allocation0]]
  $region49: #{tpu_custom_call.1} parent=0
    _
  %s5 = ssub.s32 1, %s3
  %s6 = scalar_select 0, %s5, %s3
  $region1: #{tpu_custom_call.1} parent=0
    #allocation2 [shape = 'u8[512]{0}', space=smem, size = 0x200, scoped, tag = 'input window, operand 0, single buffered']
    #allocation3 [shape = 's32[2]{0}', space=sflag, size = 0x8, scoped, tag = 'scoped memory for tpu_custom_call.1']
    #allocation4 [shape = 's32[2]{0}', space=sflag, size = 0x8, scoped, tag = 'scoped memory for tpu_custom_call.1']
    #allocation5 [shape = 's32[2]{0}', space=sflag, size = 0x8, scoped, tag = 'scoped memory for tpu_custom_call.1']
    #allocation6 [shape = 'u8[8192]{0}', space=vmem, size = 0x2000, scoped, tag = 'input window, operand 1']
    #allocation7 [shape = 'u8[8192]{0}', space=vmem, size = 0x2000, scoped, tag = 'output window, operand 0']
    %7 = vsyncpa [#allocation5], 0
    %8 = vsyncpa [#allocation3], 0
    %s9 = scalar_lea.sflag [#allocation3], 1
    %10 = vsyncpa %s9, 0
    %11 = vsyncpa [#allocation4], 0
    %s12 = scalar_lea.sflag [#allocation4], 1
    %13 = vsyncpa %s12, 0
    loop: start=0, step=1, limit=4
    $region2: #{tpu_custom_call.1} parent=1 // loop_pre_header
      _
    $region3: #{tpu_custom_call.1} parent=1 // loop_header
      %s15 = sphi 0, %s19
      %p16 = scmp.ge.s32.totalorder %s15, 4
      %s22 = sphi 0, %s34
      %s23 = sphi 0, %s30
      %s24 = sphi 0, %s22
      %s25 = sphi 0, %s23
      %s26 = sphi 0, %s24
      %s27 = sphi 0, %s25
      %s35 = sphi 0, %s35
      %s37 = sphi 0, %s35
      %s38 = sphi 0, %s37
      %s52 = sphi 0, %s38
      %s60 = sphi 0, %s62
      %s63 = sphi 0, %s60
      %s64 = sphi 0, %s63
      %s80 = sphi 0, %s64
      %s88 = sphi 0, %s90
      %s91 = sphi 0, %s88
      %s92 = sphi 0, %s91
      %s108 = sphi 0, %s92
    $region4: #{tpu_custom_call.1} parent=1 // loop_header_branch
      %18 = sbr.rel (%p16) target = $region8
    $region5: #{tpu_custom_call.1} parent=1 // loop_body
      %s20 = ssub.s32 %s15, 1
      %s21 = ssub.s32 %s15, 2
      %s28 = sadd.s32 1, %s23
      %p29 = scmp.ge.s32.totalorder %s28, 1
      %s30 = scalar_select %p29, 0, %s28
      %s31 = sadd.s32 1, %s22
      %s32 = scalar_select %p29, %s31, %s22
      %p33 = scmp.ge.s32.totalorder %s32, 2
      %s34 = scalar_select %p33, 0, %s32
      %s36 = sadd.s32 %s35, 1
      %p39 = scmp.eq.s32.totalorder %s15, 1
      %p40 = scmp.ne.s32.totalorder %s35, %s37
      %p41 = scmp.eq.s32.totalorder %s15, 0
      %p42 = por %p40, %p41
      %p43 = scmp.ne.s32.totalorder %s35, %s37
      %p44 = scmp.eq.s32.totalorder %s20, 1
      %p45 = por %p43, %p44
      %p46 = scmp.ne.s32.totalorder %s37, %s38
      %p47 = scmp.eq.s32.totalorder %s20, 0
      %p48 = por %p46, %p47
      %p49 = scmp.ne.s32.totalorder %s37, %s38
      %p50 = scmp.eq.s32.totalorder %s21, 1
      %p51 = por %p49, %p50
      %p53 = scmp.ne.s32.totalorder %s38, %s52
      %p54 = scmp.eq.s32.totalorder %s21, 0
      %p55 = por %p53, %p54
      %s56 = ssub.s32 %s22, %s34
      %s57 = ssub.s32 %s23, %s30
      %s58 = sor.u32 %s56, %s57
      %p59 = scmp.eq.s32.totalorder %s58, 0
      %s61 = sadd.s32 %s60, 1
      %s62 = scalar_select %p59, %s60, %s61
      %p65 = pneg %p59
      %p66 = scmp.eq.s32.totalorder %s15, 1
      %p67 = por %p65, %p66
      %p68 = scmp.ne.s32.totalorder %s60, %s63
      %p69 = scmp.eq.s32.totalorder %s15, 0
      %p70 = por %p68, %p69
      %p71 = scmp.ne.s32.totalorder %s60, %s63
      %p72 = scmp.eq.s32.totalorder %s20, 1
      %p73 = por %p71, %p72
      %p74 = scmp.ne.s32.totalorder %s63, %s64
      %p75 = scmp.eq.s32.totalorder %s20, 0
      %p76 = por %p74, %p75
      %p77 = scmp.ne.s32.totalorder %s63, %s64
      %p78 = scmp.eq.s32.totalorder %s21, 1
      %p79 = por %p77, %p78
      %p81 = scmp.ne.s32.totalorder %s64, %s80
      %p82 = scmp.eq.s32.totalorder %s21, 0
      %p83 = por %p81, %p82
      %s84 = ssub.s32 %s22, %s34
      %s85 = ssub.s32 %s23, %s30
      %s86 = sor.u32 %s84, %s85
      %p87 = scmp.eq.s32.totalorder %s86, 0
      %s89 = sadd.s32 %s88, 1
      %s90 = scalar_select %p87, %s88, %s89
      %p93 = pneg %p87
      %p94 = scmp.eq.s32.totalorder %s15, 1
      %p95 = por %p93, %p94
      %p96 = scmp.ne.s32.totalorder %s88, %s91
      %p97 = scmp.eq.s32.totalorder %s15, 0
      %p98 = por %p96, %p97
      %p99 = scmp.ne.s32.totalorder %s88, %s91
      %p100 = scmp.eq.s32.totalorder %s20, 1
      %p101 = por %p99, %p100
      %p102 = scmp.ne.s32.totalorder %s91, %s92
      %p103 = scmp.eq.s32.totalorder %s20, 0
      %p104 = por %p102, %p103
      %p105 = scmp.ne.s32.totalorder %s91, %s92
      %p106 = scmp.eq.s32.totalorder %s21, 1
      %p107 = por %p105, %p106
      %p109 = scmp.ne.s32.totalorder %s92, %s108
      %p110 = scmp.eq.s32.totalorder %s21, 0
      %p111 = por %p109, %p110
      %p112 = scmp.le.s32.totalorder 1, %s15
      %p113 = scmp.lt.s32.totalorder %s15, 3
      %p114 = pnand %p112, %p113
      %p115 = pneg %p114
      // Predicated region
      $region9: #{tpu_custom_call.1} parent=5 // pred_check
        _
      $region10: #{tpu_custom_call.1} parent=5 // pred_check_branch
        %117 = sbr.rel (%p114) target = $region12
      $region11: #{tpu_custom_call.1} parent=5 // pred_region
        %s118 = ssub.s32 %s15, 1
        // Predicated region
        $region13: #{tpu_custom_call.1} parent=11 // pred_check
          %p119 = pneg %p48
        $region14: #{tpu_custom_call.1} parent=11 // pred_check_branch
          %121 = sbr.rel (%p119) target = $region16
        $region15: #{tpu_custom_call.1} parent=11 // pred_region
          %s123 = ssub.s32 16, 16
          %124 = vsyncadd [#allocation5], %s123
          %127 = dma.hbm_to_smem %s0, 16, [#allocation2], [#allocation5]
        $region16: #{tpu_custom_call.1} parent=11 // pred_fallthru
          _
      $region12: #{tpu_custom_call.1} parent=5 // pred_fallthru
        _
      %p128 = scmp.lt.s32.totalorder %s15, 2
      // Predicated region
      $region17: #{tpu_custom_call.1} parent=5 // pred_check
        %p129 = pneg %p128
      $region18: #{tpu_custom_call.1} parent=5 // pred_check_branch
        %131 = sbr.rel (%p129) target = $region20
      $region19: #{tpu_custom_call.1} parent=5 // pred_region
        // Predicated region
        $region21: #{tpu_custom_call.1} parent=19 // pred_check
          %p132 = pneg %p70
        $region22: #{tpu_custom_call.1} parent=19 // pred_check_branch
          %134 = sbr.rel (%p132) target = $region24
        $region23: #{tpu_custom_call.1} parent=19 // pred_region
          %s135 = sand.u32 %s60, 1
          %s136 = scalar_lea.sflag [#allocation3], %s135
          %s137 = sand.u32 %s60, 1
          %s138 = smul.addr %s137, 8
          %s139 = scalar_lea.vmem [#allocation6], %s138
          %s140 = smul.u32 2, %s23
          %s142 = ssub.s32 128, 128
          %143 = vsyncadd %s136, %s142
          %s144 = smul.addr %s22, 2
          %s145 = sadd.s32 %s140, %s144
          %s146 = smul.addr %s145, 64
          %s147 = scalar_lea.hbm %s1, %s146
          %s149 = sshll.u32 %s139, 4
          %s150 = int_to_ptr.vmem [resolvable:$true] %s149
          %152 = dma.hbm_to_vmem [thread:$0]  %s147, 128, %s150, %s136
        $region24: #{tpu_custom_call.1} parent=19 // pred_fallthru
          _
      $region20: #{tpu_custom_call.1} parent=5 // pred_fallthru
        _
      %p153 = scmp.le.s32.totalorder 1, %s15
      %p154 = scmp.lt.s32.totalorder %s15, 3
      %p155 = pnand %p153, %p154
      %p156 = pneg %p155
      // Predicated region
      $region25: #{tpu_custom_call.1} parent=5 // pred_check
        _
      $region26: #{tpu_custom_call.1} parent=5 // pred_check_branch
        %158 = sbr.rel (%p155) target = $region28
      $region27: #{tpu_custom_call.1} parent=5 // pred_region
        %s159 = ssub.s32 %s15, 1
        // Predicated region
        $region29: #{tpu_custom_call.1} parent=27 // pred_check
          %p160 = pneg %p48
        $region30: #{tpu_custom_call.1} parent=27 // pred_check_branch
          %162 = sbr.rel (%p160) target = $region32
        $region31: #{tpu_custom_call.1} parent=27 // pred_region
          %163 = dma.done [#allocation5], 16
        $region32: #{tpu_custom_call.1} parent=27 // pred_fallthru
          _
        %s164 = sand.u32 %s63, 1
        %s165 = scalar_lea.sflag [#allocation3], %s164
        %s166 = sand.u32 %s63, 1
        %s167 = smul.addr %s166, 8
        %s168 = scalar_lea.vmem [#allocation6], %s167
        // Predicated region
        $region33: #{tpu_custom_call.1} parent=27 // pred_check
          %p169 = pneg %p76
        $region34: #{tpu_custom_call.1} parent=27 // pred_check_branch
          %171 = sbr.rel (%p169) target = $region36
        $region35: #{tpu_custom_call.1} parent=27 // pred_region
          %172 = dma.done %s165, 128
        $region36: #{tpu_custom_call.1} parent=27 // pred_fallthru
          _
        %173 = sfence
        %p174 = pneg %p48
        %p175 = pneg %p45
        %s176 = sand.u32 %s63, 1
        %s177 = scalar_lea.sflag [#allocation3], %s176
        %s178 = sand.u32 %s63, 1
        %s179 = smul.addr %s178, 8
        %s180 = scalar_lea.vmem [#allocation6], %s179
        %p181 = pneg %p76
        %p182 = pneg %p73
        %p183 = pneg %p104
        %p184 = pneg %p101
        %s185 = sand.u32 %s91, 1
        %s186 = scalar_lea.sflag [#allocation4], %s185
        %s187 = sand.u32 %s91, 1
        %s188 = smul.addr %s187, 8
        %s189 = scalar_lea.vmem [#allocation7], %s188
        %s190 = smul.u32 2, %s25
        %s191 = smul.u32 2, %s25
        %v192 = vld [vmem:[%s168] ss:$4 sm:$0x3]
        %s193 = sld [smem:[#allocation2]]
        %v194 = vstv %s193
        %v195 = vmul.f32 %v192, %v194
        %s196 = scalar_lea.vmem %s168, 1 [#allocation6]
        %v197 = vld [vmem:[%s196] ss:$4 sm:$0x3]
        %s198 = sld [smem:[#allocation2 + $0x1]]
        %v199 = vstv %s198
        %v200 = vmul.f32 %v197, %v199
        %v201 = vadd.f32 %v195, %v200
        %s202 = scalar_lea.vmem %s168, 2 [#allocation6]
        %v203 = vld [vmem:[%s202] ss:$4 sm:$0x3]
        %s204 = sld [smem:[#allocation2 + $0x2]]
        %v205 = vstv %s204
        %v206 = vmul.f32 %v203, %v205
        %v207 = vadd.f32 %v201, %v206
        %s208 = scalar_lea.vmem %s168, 3 [#allocation6]
        %v209 = vld [vmem:[%s208] ss:$4 sm:$0x3]
        %s210 = sld [smem:[#allocation2 + $0x3]]
        %v211 = vstv %s210
        %v212 = vmul.f32 %v209, %v211
        %v213 = vadd.f32 %v207, %v212
        %v214 = vxor.u32 %v213, 2147483648
        %v215 = vmul.f32 %v214, 1.442695
        %v216 = vpow.pop %v215
        %v217 = vadd.f32 %v216, 1.0
        %v218 = vrcp.pop %v217
        %v219 = vmul.f32 1.0, %v218
        %v220 = vld [vmem:[%s168] sm:$0xff]
        %v222 = vlaneseq
        %v223 = vshrl.u32 %v222, 7
        %v224 = vsub.s32 0, %v223
        %v225 = vrot.slane %v219, %v224
        %v226 = vlaneseq
        %v227 = vshrl.u32 %v226, 7
        %v228 = vsub.s32 1, %v227
        %v229 = vrot.slane %v219, %v228
        %v230 = vcombine.low %v225, %v229
        %v232 = vmul.f32 %v220, %v230
        %vm233 = vcmask 1043456
        %vm234 = vcmask 588804
        %vm235 = vmor %vm234, %vm233
        %236 = vst.msk [vmem:[%s189] sm:$0xff] %vm235, %v232
        %s237 = sand.u32 %s91, 1
        %s238 = scalar_lea.sflag [#allocation4], %s237
        %s239 = sand.u32 %s91, 1
        %s240 = smul.addr %s239, 8
        %s241 = scalar_lea.vmem [#allocation7], %s240
        // Predicated region
        $region37: #{tpu_custom_call.1} parent=27 // pred_check
          %p242 = pneg %p101
        $region38: #{tpu_custom_call.1} parent=27 // pred_check_branch
          %244 = sbr.rel (%p242) target = $region40
        $region39: #{tpu_custom_call.1} parent=27 // pred_region
          %s245 = smul.u32 2, %s25
          %s247 = ssub.s32 128, 128
          %248 = vsyncadd %s238, %s247
          %s249 = smul.addr %s24, 2
          %s250 = sadd.s32 %s245, %s249
          %s251 = smul.addr %s250, 64
          %s252 = scalar_lea.hbm %s2, %s251
          %s254 = sshll.u32 %s241, 4
          %s255 = int_to_ptr.vmem [resolvable:$true] %s254
          %257 = dma.vmem_to_hbm [thread:$0]  %s255, 128, %s252, %s238
        $region40: #{tpu_custom_call.1} parent=27 // pred_fallthru
          _
      $region28: #{tpu_custom_call.1} parent=5 // pred_fallthru
        _
      %p258 = scmp.le.s32.totalorder 2, %s15
      // Predicated region
      $region41: #{tpu_custom_call.1} parent=5 // pred_check
        %p259 = pneg %p258
      $region42: #{tpu_custom_call.1} parent=5 // pred_check_branch
        %261 = sbr.rel (%p259) target = $region44
      $region43: #{tpu_custom_call.1} parent=5 // pred_region
        %s262 = ssub.s32 %s15, 2
        // Predicated region
        $region45: #{tpu_custom_call.1} parent=43 // pred_check
          %p263 = pneg %p107
        $region46: #{tpu_custom_call.1} parent=43 // pred_check_branch
          %265 = sbr.rel (%p263) target = $region48
        $region47: #{tpu_custom_call.1} parent=43 // pred_region
          %s266 = sand.u32 %s92, 1
          %s267 = scalar_lea.sflag [#allocation4], %s266
          %s268 = sand.u32 %s92, 1
          %s269 = smul.addr %s268, 8
          %s270 = scalar_lea.vmem [#allocation7], %s269
          %271 = dma.done %s267, 128
        $region48: #{tpu_custom_call.1} parent=43 // pred_fallthru
          _
      $region44: #{tpu_custom_call.1} parent=5 // pred_fallthru
        _
    $region6: #{tpu_custom_call.1} parent=1 // loop_footer
      %s19 = sadd.s32 1, %s15
    $region7: #{tpu_custom_call.1} parent=1 // loop_footer_branch
      %14 = sbr.rel target = $region3
    $region8: #{tpu_custom_call.1} parent=1 // loop_exit
      _
    %272 = vsyncpa [#allocation3], 1
    %s273 = scalar_lea.sflag [#allocation3], 1
    %274 = vsyncpa %s273, 1
    %275 = vsyncpa [#allocation4], 1
    %s276 = scalar_lea.sflag [#allocation4], 1
    %277 = vsyncpa %s276, 1
    %278 = vsyncpa [#allocation5], 1
    %s279 = scalar_lea.sflag [#allocation5], 1
    %280 = vsyncpa %s279, 1

</llo_original>
